<compile_context>
chip_gen: v7x
topology: tpu7x:2x2x1
jax: 0.10.0
libtpu: 0.0.40
codegen_flags: <defaults>
</compile_context>

<pallas_src>
import jax
import jax.numpy as jnp
from jax.experimental import pallas as pl
from jax.experimental.pallas import tpu as pltpu


# ----------------------------- kernel -----------------------------------

def disease_embedding_kernel(idx_ref, table_ref, wt_ref, b_ref, a_ref, out_ref):
    """Embedding lookup + Linear + PReLU for all flattened tokens in one shot.

    idx_ref   : (N, 1) int32   flattened class ids
    table_ref : (C, D) f32     embedding table
    wt_ref    : (D, D) f32     linear1 weight, PRE-TRANSPOSED in the wrapper
    b_ref     : (1, D) f32     linear1 bias
    a_ref     : (1, 1) f32     PReLU slope (num_parameters=1)
    out_ref   : (N, D) f32
    """
    f32 = jnp.float32
    idx = idx_ref[...]                                   # (N, 1)
    n = idx.shape[0]
    c = table_ref.shape[0]

    # Embedding gather as a one-hot matmul (exact for integer indices, MXU friendly).
    onehot = (idx == jax.lax.broadcasted_iota(jnp.int32, (n, c), 1)).astype(f32)
    emb = jnp.dot(onehot, table_ref[...],
                  preferred_element_type=f32,
                  precision=jax.lax.Precision.HIGHEST)    # (N, D)

    # linear1: y = emb @ W.T + b  (W already transposed outside the kernel).
    y = jnp.dot(emb, wt_ref[...],
                preferred_element_type=f32,
                precision=jax.lax.Precision.HIGHEST) + b_ref[...]

    # PReLU with a single shared slope.
    a = a_ref[...]                                        # (1, 1) broadcasts over (N, D)
    out_ref[...] = jnp.where(y > 0.0, y, y * a).astype(out_ref.dtype)


# ----------------------------- wrapper -----------------------------------

def disease_embedding(x, table, w1, b1, prelu_a):
    """x: int array of class ids, arbitrary shape. Returns x.shape + (D,)."""
    orig_shape = x.shape
    c, d = table.shape

    n = 1
    for s in orig_shape:
        n *= s

    idx2d = x.reshape(n, 1).astype(jnp.int32)             # (N, 1) for VMEM
    wt = jnp.asarray(w1, jnp.float32).T                   # pre-transpose ONCE, host side
    b2 = jnp.asarray(b1, jnp.float32).reshape(1, d)
    a2 = jnp.asarray(prelu_a, jnp.float32).reshape(1, 1)

    def full_spec(arr):
        nd = arr.ndim
        return pl.BlockSpec(arr.shape, lambda i, nd=nd: (0,) * nd)

    flops = 2 * n * c * d + 2 * n * d * d
    bytes_accessed = 4 * (idx2d.size + table.size + wt.size + b2.size + a2.size + n * d)

    out = pl.pallas_call(
        disease_embedding_kernel,
        out_shape=jax.ShapeDtypeStruct((n, d), jnp.float32),
        # Single grid step: the whole problem fits in VMEM; avoids serial-grid
        # per-step overhead on 1-TC chips (v5e/v6e). (On v7x one could split the
        # token rows over a 2-way "parallel" axis, but at these sizes it is noise.)
        grid=(1,),
        in_specs=[full_spec(idx2d), full_spec(table), full_spec(wt),
                  full_spec(b2), full_spec(a2)],
        out_specs=pl.BlockSpec((n, d), lambda i: (0, 0)),
        compiler_params=pltpu.CompilerParams(dimension_semantics=("arbitrary",)),
        cost_estimate=pl.CostEstimate(flops=flops, transcendentals=0,
                                      bytes_accessed=bytes_accessed),
    )(idx2d, table, wt, b2, a2)

    return out.reshape(*orig_shape, d)


# --------------------------- pure-JAX reference ---------------------------

def reference_forward(x, table, w1, b1, a):
    emb = table[x]                                                        # (..., D)
    y = jnp.dot(emb, w1.T, precision=jax.lax.Precision.HIGHEST) + b1
    return jnp.where(y > 0, y, a * y)                                     # PReLU


# ------------------------------- main -------------------------------------

if __name__ == "__main__":
    num_classes, embedding_dim = 32, 32
    B, L = 2, 8

    key = jax.random.PRNGKey(0)
    k_tab, k_w, k_b, k_x = jax.random.split(key, 4)

    table = jax.random.normal(k_tab, (num_classes, embedding_dim), jnp.float32) * 0.05
    w1 = jax.random.normal(k_w, (embedding_dim, embedding_dim), jnp.float32) * 0.05
    b1 = jax.random.normal(k_b, (embedding_dim,), jnp.float32) * 0.05
    prelu_a = jnp.array(0.25, jnp.float32)            # nn.PReLU() default init

    x = jax.random.randint(k_x, (B, L), 0, num_classes, jnp.int32)

    out = disease_embedding(x, table, w1, b1, prelu_a)
    out = jax.block_until_ready(out)

    ref = reference_forward(x, table, w1, b1, prelu_a)
    assert out.shape == (B, L, embedding_dim)
    assert jnp.allclose(out, ref, atol=1e-5, rtol=1e-5), "mismatch vs pure-JAX reference"

    print("KERNEL_OK")
</pallas_src>

<mosaic_0001>
module attributes {stable_mosaic.version = 11 : i64} {
  func.func @disease_embedding_kernel(%arg0: i32, %arg1: memref<16x1xi32, #tpu.memory_space<vmem>>, %arg2: memref<32x32xf32, #tpu.memory_space<vmem>>, %arg3: memref<32x32xf32, #tpu.memory_space<vmem>>, %arg4: memref<1x32xf32, #tpu.memory_space<vmem>>, %arg5: memref<1x1xf32, #tpu.memory_space<vmem>>, %arg6: memref<16x32xf32, #tpu.memory_space<vmem>>) attributes {dimension_semantics = [#tpu.dimension_semantics<arbitrary>], iteration_bounds = array<i64: 1>, scalar_prefetch = 0 : i64, scratch_operands = 0 : i64, tpu.core_type = #tpu.core_type<tc>, window_params = [{pipeline_mode = #tpu.pipeline_mode<synchronous>, transform_indices = @transform_0, window_bounds = array<i64: 16, 1>}, {pipeline_mode = #tpu.pipeline_mode<synchronous>, transform_indices = @transform_1, window_bounds = array<i64: 32, 32>}, {pipeline_mode = #tpu.pipeline_mode<synchronous>, transform_indices = @transform_2, window_bounds = array<i64: 32, 32>}, {pipeline_mode = #tpu.pipeline_mode<synchronous>, transform_indices = @transform_3, window_bounds = array<i64: 1, 32>}, {pipeline_mode = #tpu.pipeline_mode<synchronous>, transform_indices = @transform_4, window_bounds = array<i64: 1, 1>}, {pipeline_mode = #tpu.pipeline_mode<synchronous>, transform_indices = @transform_5, window_bounds = array<i64: 16, 32>}]} {
    %c0 = arith.constant 0 : index
    %c0_0 = arith.constant 0 : index
    %0 = vector.load %arg1[%c0, %c0_0] : memref<16x1xi32, #tpu.memory_space<vmem>>, vector<16x1xi32>
    %1 = tpu.iota {dimensions = array<i32: 1>} : vector<16x32xi32>
    %2 = vector.broadcast %0 : vector<16x1xi32> to vector<16x32xi32>
    %3 = arith.cmpi eq, %2, %1 : vector<16x32xi32>
    %4 = arith.extui %3 : vector<16x32xi1> to vector<16x32xi32>
    %5 = arith.sitofp %4 : vector<16x32xi32> to vector<16x32xf32>
    %c0_1 = arith.constant 0 : index
    %c0_2 = arith.constant 0 : index
    %6 = vector.load %arg2[%c0_1, %c0_2] : memref<32x32xf32, #tpu.memory_space<vmem>>, vector<32x32xf32>
    %cst = arith.constant dense<0.000000e+00> : vector<16x32xf32>
    %7 = tpu.matmul %5, %6, %cst {dimension_numbers = #tpu.dot_dimension_numbers<[1], [0], [0], [1], [0, 0, 1, 1], [], []>, precision = #tpu.contract_precision<fp32>} : vector<16x32xf32>, vector<32x32xf32>, vector<16x32xf32> -> vector<16x32xf32>
    %c0_3 = arith.constant 0 : index
    %c0_4 = arith.constant 0 : index
    %8 = vector.load %arg3[%c0_3, %c0_4] : memref<32x32xf32, #tpu.memory_space<vmem>>, vector<32x32xf32>
    %cst_5 = arith.constant dense<0.000000e+00> : vector<16x32xf32>
    %9 = tpu.matmul %7, %8, %cst_5 {dimension_numbers = #tpu.dot_dimension_numbers<[1], [0], [0], [1], [0, 0, 1, 1], [], []>, precision = #tpu.contract_precision<fp32>} : vector<16x32xf32>, vector<32x32xf32>, vector<16x32xf32> -> vector<16x32xf32>
    %c0_6 = arith.constant 0 : index
    %c0_7 = arith.constant 0 : index
    %10 = vector.load %arg4[%c0_6, %c0_7] : memref<1x32xf32, #tpu.memory_space<vmem>>, vector<1x32xf32>
    %11 = vector.broadcast %10 : vector<1x32xf32> to vector<16x32xf32>
    %12 = arith.addf %9, %11 : vector<16x32xf32>
    %c0_8 = arith.constant 0 : index
    %c0_9 = arith.constant 0 : index
    %13 = vector.load %arg5[%c0_8, %c0_9] : memref<1x1xf32, #tpu.memory_space<vmem>>, vector<1x1xf32>
    %cst_10 = arith.constant 0.000000e+00 : f32
    %14 = vector.broadcast %cst_10 : f32 to vector<16x32xf32>
    %15 = arith.cmpf ogt, %12, %14 : vector<16x32xf32>
    %16 = vector.broadcast %13 : vector<1x1xf32> to vector<16x32xf32>
    %17 = arith.mulf %12, %16 : vector<16x32xf32>
    %18 = arith.select %15, %12, %17 : vector<16x32xi1>, vector<16x32xf32>
    %c0_11 = arith.constant 0 : index
    %c0_12 = arith.constant 0 : index
    %19 = vector.load %arg6[%c0_11, %c0_12] : memref<16x32xf32, #tpu.memory_space<vmem>>, vector<16x32xf32>
    tpu.vector_store %arg6[%c0_11, %c0_12], %18 {strides = array<i32>} : memref<16x32xf32, #tpu.memory_space<vmem>>, vector<16x32xf32>,
    return
  }
  func.func @transform_0(%arg0: i32) -> (i32, i32) {
    %c0_i32 = arith.constant 0 : i32
    %c0_i32_0 = arith.constant 0 : i32
    %c0_i32_1 = arith.constant 0 : i32
    return %c0_i32, %c0_i32_0 : i32, i32
  }
  func.func @transform_1(%arg0: i32) -> (i32, i32) {
    %c0_i32 = arith.constant 0 : i32
    %c0_i32_0 = arith.constant 0 : i32
    %c0_i32_1 = arith.constant 0 : i32
    return %c0_i32, %c0_i32_0 : i32, i32
  }
  func.func @transform_2(%arg0: i32) -> (i32, i32) {
    %c0_i32 = arith.constant 0 : i32
    %c0_i32_0 = arith.constant 0 : i32
    %c0_i32_1 = arith.constant 0 : i32
    return %c0_i32, %c0_i32_0 : i32, i32
  }
  func.func @transform_3(%arg0: i32) -> (i32, i32) {
    %c0_i32 = arith.constant 0 : i32
    %c0_i32_0 = arith.constant 0 : i32
    %c0_i32_1 = arith.constant 0 : i32
    return %c0_i32, %c0_i32_0 : i32, i32
  }
  func.func @transform_4(%arg0: i32) -> (i32, i32) {
    %c0_i32 = arith.constant 0 : i32
    %c0_i32_0 = arith.constant 0 : i32
    %c0_i32_1 = arith.constant 0 : i32
    return %c0_i32, %c0_i32_0 : i32, i32
  }
  func.func @transform_5(%arg0: i32) -> (i32, i32) {
    %c0_i32 = arith.constant 0 : i32
    %c0_i32_0 = arith.constant 0 : i32
    %c0_i32_1 = arith.constant 0 : i32
    return %c0_i32, %c0_i32_0 : i32, i32
  }
}

</mosaic_0001>

<llo_original>
// kernel: tpu_custom_call.1
$region0: #{tpu_custom_call.1}
  #allocation0 [shape = 'u32[]', space=smem, size = 0x4, offset = 0x4, fixed_abs, tag = 'smem constant byte address 0x4 - core index']
  #allocation1 [shape = 'u32[144,128]{1,0:T(1,128)}', space=vmem, size = 0x12000, scoped, tag = 'internal scratch']
  #allocation2 [shape = 'f32[1,1]{1,0:T(1,128)S(1)}', space=vmem, size = 0x200, scoped, tag = 'scoped memory for tpu_custom_call.1']
  %s0 = inlined_call_operand.vmem [shape: s32[16,1], index: 0, kind: input, shape index: {}]
  %s1 = inlined_call_operand.hbm [shape: f32[32,32], index: 1, kind: input, shape index: {}]
  %s2 = inlined_call_operand.hbm [shape: f32[32,32], index: 2, kind: input, shape index: {}]
  %s3 = inlined_call_operand.vmem [shape: f32[1,32], index: 3, kind: input, shape index: {}]
  %s4 = inlined_call_operand.<no memory space> [shape: f32[1,1], index: 4, kind: input, shape index: {}]
  %s5 = inlined_call_operand.hbm [shape: f32[16,32], index: 5, kind: output, shape index: {}]
  %s6 = sld [smem:[#allocation0]]
  $region38: #{tpu_custom_call.1} parent=0
    _
  %s8 = ssub.s32 1, %s6
  %s9 = scalar_select 0, %s8, %s6
  %v10 = vstv %s4
  %11 = vst [vmem:[#allocation2] sm:$0x1] %v10
  $region1: #{tpu_custom_call.1} parent=0
    #allocation3 [shape = 'u8[16384]{0}', space=vmem, size = 0x4000, scoped, tag = 'input window, operand 1, single buffered']
    #allocation4 [shape = 's32[1]{0}', space=sflag, size = 0x4, scoped, tag = 'scoped memory for tpu_custom_call.1']
    #allocation5 [shape = 's32[1]{0}', space=sflag, size = 0x4, scoped, tag = 'scoped memory for tpu_custom_call.1']
    #allocation6 [shape = 'u8[16384]{0}', space=vmem, size = 0x4000, scoped, tag = 'input window, operand 2, single buffered']
    #allocation7 [shape = 's32[1]{0}', space=sflag, size = 0x4, scoped, tag = 'scoped memory for tpu_custom_call.1']
    #allocation8 [shape = 'u8[8192]{0}', space=vmem, size = 0x2000, scoped, tag = 'output window, operand 0, single buffered']
    %12 = vsyncpa [#allocation4], 0
    %13 = vsyncpa [#allocation7], 0
    %14 = vsyncpa [#allocation5], 0
    // Predicated region
    $region2: #{tpu_custom_call.1} parent=1 // pred_check
      _
    $region3: #{tpu_custom_call.1} parent=1 // pred_check_branch
      %16 = sbr.rel (0) target = $region5
    $region4: #{tpu_custom_call.1} parent=1 // pred_region
      _
    $region5: #{tpu_custom_call.1} parent=1 // pred_fallthru
      _
    // Predicated region
    $region6: #{tpu_custom_call.1} parent=1 // pred_check
      _
    $region7: #{tpu_custom_call.1} parent=1 // pred_check_branch
      %18 = sbr.rel (0) target = $region9
    $region8: #{tpu_custom_call.1} parent=1 // pred_region
      %s20 = ssub.s32 512, 512
      %21 = vsyncadd [#allocation4], %s20
      %s22 = sshll.u32 [#allocation3], 4
      %s23 = int_to_ptr.vmem [resolvable:$true] %s22
      %28 = dma.hbm_to_vmem [thread:$0]  %s1, 512, %s23, [#allocation4], 128, 128, 8
    $region9: #{tpu_custom_call.1} parent=1 // pred_fallthru
      _
    // Predicated region
    $region10: #{tpu_custom_call.1} parent=1 // pred_check
      _
    $region11: #{tpu_custom_call.1} parent=1 // pred_check_branch
      %30 = sbr.rel (0) target = $region13
    $region12: #{tpu_custom_call.1} parent=1 // pred_region
      %s32 = ssub.s32 512, 512
      %33 = vsyncadd [#allocation7], %s32
      %s34 = sshll.u32 [#allocation6], 4
      %s35 = int_to_ptr.vmem [resolvable:$true] %s34
      %40 = dma.hbm_to_vmem [thread:$0]  %s2, 512, %s35, [#allocation7], 128, 128, 8
    $region13: #{tpu_custom_call.1} parent=1 // pred_fallthru
      _
    // Predicated region
    $region14: #{tpu_custom_call.1} parent=1 // pred_check
      _
    $region15: #{tpu_custom_call.1} parent=1 // pred_check_branch
      %42 = sbr.rel (0) target = $region17
    $region16: #{tpu_custom_call.1} parent=1 // pred_region
      _
    $region17: #{tpu_custom_call.1} parent=1 // pred_fallthru
      _
    // Predicated region
    $region18: #{tpu_custom_call.1} parent=1 // pred_check
      _
    $region19: #{tpu_custom_call.1} parent=1 // pred_check_branch
      %44 = sbr.rel (0) target = $region21
    $region20: #{tpu_custom_call.1} parent=1 // pred_region
      _
    $region21: #{tpu_custom_call.1} parent=1 // pred_fallthru
      _
    // Predicated region
    $region22: #{tpu_custom_call.1} parent=1 // pred_check
      _
    $region23: #{tpu_custom_call.1} parent=1 // pred_check_branch
      %46 = sbr.rel (0) target = $region25
    $region24: #{tpu_custom_call.1} parent=1 // pred_region
      %47 = dma.done [#allocation4], 512
    $region25: #{tpu_custom_call.1} parent=1 // pred_fallthru
      _
    // Predicated region
    $region26: #{tpu_custom_call.1} parent=1 // pred_check
      _
    $region27: #{tpu_custom_call.1} parent=1 // pred_check_branch
      %49 = sbr.rel (0) target = $region29
    $region28: #{tpu_custom_call.1} parent=1 // pred_region
      %50 = dma.done [#allocation7], 512
    $region29: #{tpu_custom_call.1} parent=1 // pred_fallthru
      _
    %v51 = vld [vmem:[%s0] sm:$0xff]
    %v52 = vld [vmem:[%s0 + $0x8] sm:$0xff]
    %v53 = vlaneseq
    %v54 = vand.u32 %v53, 127
    %55 = vset.pattern.permute.xlu0 0
    %56 = vperm.xlu0 %55, %v51
    %v57 = vpop.permute.xlu0 %56
    %58 = vset.pattern.permute.xlu0 0
    %59 = vperm.xlu0 %58, %v52
    %v60 = vpop.permute.xlu0 %59
    %vm61 = vcmp.eq.s32.totalorder %v57, %v54
    %vm62 = vcmp.eq.s32.totalorder %v60, %v54
    %v63 = vsel %vm61, 1, 0
    %v64 = vsel %vm62, 1, 0
    %v65 = vcvt.s32.f32 %v63
    %v66 = vcvt.s32.f32 %v64
    %v67 = vld [vmem:[#allocation3] sm:$0xff]
    %v68 = vld [vmem:[#allocation3 + $0x8] sm:$0xff]
    %v69 = vld [vmem:[#allocation3 + $0x10] sm:$0xff]
    %v70 = vld [vmem:[#allocation3 + $0x18] sm:$0xff]
    %vm71 = vcmask 261120
    %v73 = vsel %vm71, %v65, 0
    %v76 = vsel %vm71, %v66, 0
    %78 = vmatprep.subr.mxu0 0.0
    %v79 = vand.u32 %v67, 4294901760
    %80 = vmatpush1.msra.mxu0 %v79
    %81 = vmatprep.subr.mxu0 0.0
    %v82 = vand.u32 %v68, 4294901760
    %83 = vmatpush1.msra.mxu0 %v82
    %84 = vmatprep.subr.mxu0 0.0
    %v85 = vand.u32 %v69, 4294901760
    %86 = vmatpush1.msra.mxu0 %v85
    %87 = vmatprep.subr.mxu0 0.0
    %v88 = vand.u32 %v70, 4294901760
    %89 = vmatpush1.msra.mxu0 %v88
    %90 = vmatprep.subr.mxu0 0.0
    %91 = vmatpush1.msra.mxu0 0.0
    %92 = vmatprep.subr.mxu0 0.0
    %93 = vmatpush1.msra.mxu0 0.0
    %94 = vmatprep.subr.mxu0 0.0
    %95 = vmatpush1.msra.mxu0 0.0
    %96 = vmatprep.subr.mxu0 0.0
    %97 = vmatpush1.msra.mxu0 0.0
    %98 = vmatprep.subr.mxu0 0.0
    %99 = vmatpush1.msra.mxu0 0.0
    %100 = vmatprep.subr.mxu0 0.0
    %101 = vmatpush1.msra.mxu0 0.0
    %102 = vmatprep.subr.mxu0 0.0
    %103 = vmatpush1.msra.mxu0 0.0
    %104 = vmatprep.subr.mxu0 0.0
    %105 = vmatpush1.msra.mxu0 0.0
    %106 = vmatprep.subr.mxu0 0.0
    %107 = vmatpush1.msra.mxu0 0.0
    %108 = vmatprep.subr.mxu0 0.0
    %109 = vmatpush1.msra.mxu0 0.0
    %110 = vmatprep.subr.mxu0 0.0
    %111 = vmatpush1.msra.mxu0 0.0
    %112 = vmatprep.subr.mxu0 0.0
    %113 = vmatpush1.msra.mxu0 0.0
    %114 = vmatprep.subr.mxu0 0.0
    %115 = vmatpush1.msra.mxu0 0.0
    %116 = vmatprep.subr.mxu0 0.0
    %117 = vmatpush1.msra.mxu0 0.0
    %118 = vmatprep.subr.mxu0 0.0
    %119 = vmatpush1.msra.mxu0 0.0
    %120 = vmatprep.subr.mxu0 0.0
    %121 = vmatpush1.msra.mxu0 0.0
    %122 = vmatprep.subr.mxu0 0.0
    %123 = vmatpush1.msra.mxu0 0.0
    %124 = vmatprep.subr.mxu0 0.0
    %125 = vmatpush1.msra.mxu0 0.0
    %126 = vmatprep.subr.mxu0 0.0
    %127 = vmatpush1.msra.mxu0 0.0
    %128 = vmatprep.subr.mxu0 0.0
    %129 = vmatpush1.msra.mxu0 0.0
    %130 = vmatprep.subr.mxu0 0.0
    %131 = vmatpush1.msra.mxu0 0.0
    %132 = vmatprep.subr.mxu0 0.0
    %133 = vmatpush1.msra.mxu0 0.0
    %134 = vmatprep.subr.mxu0 0.0
    %135 = vmatpush1.msra.mxu0 0.0
    %136 = vmatprep.subr.mxu0 0.0
    %137 = vmatpush1.msra.mxu0 0.0
    %138 = vmatprep.subr.mxu0 0.0
    %139 = vmatpush1.msra.mxu0 0.0
    %140 = vmatprep.subr.mxu0 0.0
    %141 = vmatpush1.msra.mxu0 0.0
    %142 = vmatprep.subr.mxu0 0.0
    %143 = vmatpush1.msra.mxu0 0.0
    %144 = vmatprep.subr.mxu0 0.0
    %145 = vmatpush1.msra.mxu0 0.0
    %146 = vmatprep.mubr.f32.mxu0 0.0
    %v147 = vand.u32 %v73, 4294901760
    %v148 = vsub.f32 %v73, %v147
    %v149 = vand.u32 %v148, 4294901760
    %v150 = vsub.f32 %v148, %v149
    %v151 = vand.u32 %v150, 4294901760
    %152 = vmatmul.mubr.f32.gmra.mrb[0].mxu0 %v151
    %v153 = vpop.f32.mrb[0].mxu0
    %v154 = vadd.f32 0.0, %v153
    %v155 = vpop.f32.mrb[0].mxu0
    %156 = vmatprep.mubr.f32.mxu0 0.0
    %v157 = vand.u32 %v76, 4294901760
    %v158 = vsub.f32 %v76, %v157
    %v159 = vand.u32 %v158, 4294901760
    %v160 = vsub.f32 %v158, %v159
    %v161 = vand.u32 %v160, 4294901760
    %162 = vmatmul.mubr.f32.gmra.mrb[0].mxu0 %v161
    %v163 = vpop.f32.mrb[0].mxu0
    %v164 = vadd.f32 0.0, %v163
    %v165 = vpop.f32.mrb[0].mxu0
    %166 = vdwg.mxu0
    %167 = vmatprep.subr.mxu0 0.0
    %v168 = vand.u32 %v67, 4294901760
    %v169 = vsub.f32 %v67, %v168
    %v170 = vand.u32 %v169, 4294901760
    %v171 = vsub.f32 %v169, %v170
    %v172 = vand.u32 %v171, 4294901760
    %173 = vmatpush1.msra.mxu0 %v172
    %174 = vmatprep.subr.mxu0 0.0
    %v175 = vand.u32 %v68, 4294901760
    %v176 = vsub.f32 %v68, %v175
    %v177 = vand.u32 %v176, 4294901760
    %v178 = vsub.f32 %v176, %v177
    %v179 = vand.u32 %v178, 4294901760
    %180 = vmatpush1.msra.mxu0 %v179
    %181 = vmatprep.subr.mxu0 0.0
    %v182 = vand.u32 %v69, 4294901760
    %v183 = vsub.f32 %v69, %v182
    %v184 = vand.u32 %v183, 4294901760
    %v185 = vsub.f32 %v183, %v184
    %v186 = vand.u32 %v185, 4294901760
    %187 = vmatpush1.msra.mxu0 %v186
    %188 = vmatprep.subr.mxu0 0.0
    %v189 = vand.u32 %v70, 4294901760
    %v190 = vsub.f32 %v70, %v189
    %v191 = vand.u32 %v190, 4294901760
    %v192 = vsub.f32 %v190, %v191
    %v193 = vand.u32 %v192, 4294901760
    %194 = vmatpush1.msra.mxu0 %v193
    %195 = vmatprep.subr.mxu0 0.0
    %196 = vmatpush1.msra.mxu0 0.0
    %197 = vmatprep.subr.mxu0 0.0
    %198 = vmatpush1.msra.mxu0 0.0
    %199 = vmatprep.subr.mxu0 0.0
    %200 = vmatpush1.msra.mxu0 0.0
    %201 = vmatprep.subr.mxu0 0.0
    %202 = vmatpush1.msra.mxu0 0.0
    %203 = vmatprep.subr.mxu0 0.0
    %204 = vmatpush1.msra.mxu0 0.0
    %205 = vmatprep.subr.mxu0 0.0
    %206 = vmatpush1.msra.mxu0 0.0
    %207 = vmatprep.subr.mxu0 0.0
    %208 = vmatpush1.msra.mxu0 0.0
    %209 = vmatprep.subr.mxu0 0.0
    %210 = vmatpush1.msra.mxu0 0.0
    %211 = vmatprep.subr.mxu0 0.0
    %212 = vmatpush1.msra.mxu0 0.0
    %213 = vmatprep.subr.mxu0 0.0
    %214 = vmatpush1.msra.mxu0 0.0
    %215 = vmatprep.subr.mxu0 0.0
    %216 = vmatpush1.msra.mxu0 0.0
    %217 = vmatprep.subr.mxu0 0.0
    %218 = vmatpush1.msra.mxu0 0.0
    %219 = vmatprep.subr.mxu0 0.0
    %220 = vmatpush1.msra.mxu0 0.0
    %221 = vmatprep.subr.mxu0 0.0
    %222 = vmatpush1.msra.mxu0 0.0
    %223 = vmatprep.subr.mxu0 0.0
    %224 = vmatpush1.msra.mxu0 0.0
    %225 = vmatprep.subr.mxu0 0.0
    %226 = vmatpush1.msra.mxu0 0.0
    %227 = vmatprep.subr.mxu0 0.0
    %228 = vmatpush1.msra.mxu0 0.0
    %229 = vmatprep.subr.mxu0 0.0
    %230 = vmatpush1.msra.mxu0 0.0
    %231 = vmatprep.subr.mxu0 0.0
    %232 = vmatpush1.msra.mxu0 0.0
    %233 = vmatprep.subr.mxu0 0.0
    %234 = vmatpush1.msra.mxu0 0.0
    %235 = vmatprep.subr.mxu0 0.0
    %236 = vmatpush1.msra.mxu0 0.0
    %237 = vmatprep.subr.mxu0 0.0
    %238 = vmatpush1.msra.mxu0 0.0
    %239 = vmatprep.subr.mxu0 0.0
    %240 = vmatpush1.msra.mxu0 0.0
    %241 = vmatprep.subr.mxu0 0.0
    %242 = vmatpush1.msra.mxu0 0.0
    %243 = vmatprep.subr.mxu0 0.0
    %244 = vmatpush1.msra.mxu0 0.0
    %245 = vmatprep.subr.mxu0 0.0
    %246 = vmatpush1.msra.mxu0 0.0
    %247 = vmatprep.subr.mxu0 0.0
    %248 = vmatpush1.msra.mxu0 0.0
    %249 = vmatprep.subr.mxu0 0.0
    %250 = vmatpush1.msra.mxu0 0.0
    %251 = vmatprep.mubr.f32.mxu0 0.0
    %v252 = vand.u32 %v73, 4294901760
    %253 = vmatmul.mubr.f32.gmra.mrb[0].mxu0 %v252
    %v254 = vpop.f32.mrb[0].mxu0
    %v255 = vadd.f32 %v154, %v254
    %v256 = vpop.f32.mrb[0].mxu0
    %257 = vmatprep.mubr.f32.mxu0 0.0
    %v258 = vand.u32 %v76, 4294901760
    %259 = vmatmul.mubr.f32.gmra.mrb[0].mxu0 %v258
    %v260 = vpop.f32.mrb[0].mxu0
    %v261 = vadd.f32 %v164, %v260
    %v262 = vpop.f32.mrb[0].mxu0
    %263 = vdwg.mxu0
    %264 = vmatprep.subr.mxu0 0.0
    %v265 = vand.u32 %v67, 4294901760
    %v266 = vsub.f32 %v67, %v265
    %267 = vmatpush1.msra.mxu0 %v266
    %268 = vmatprep.subr.mxu0 0.0
    %v269 = vand.u32 %v68, 4294901760
    %v270 = vsub.f32 %v68, %v269
    %271 = vmatpush1.msra.mxu0 %v270
    %272 = vmatprep.subr.mxu0 0.0
    %v273 = vand.u32 %v69, 4294901760
    %v274 = vsub.f32 %v69, %v273
    %275 = vmatpush1.msra.mxu0 %v274
    %276 = vmatprep.subr.mxu0 0.0
    %v277 = vand.u32 %v70, 4294901760
    %v278 = vsub.f32 %v70, %v277
    %279 = vmatpush1.msra.mxu0 %v278
    %280 = vmatprep.subr.mxu0 0.0
    %281 = vmatpush1.msra.mxu0 0.0
    %282 = vmatprep.subr.mxu0 0.0
    %283 = vmatpush1.msra.mxu0 0.0
    %284 = vmatprep.subr.mxu0 0.0
    %285 = vmatpush1.msra.mxu0 0.0
    %286 = vmatprep.subr.mxu0 0.0
    %287 = vmatpush1.msra.mxu0 0.0
    %288 = vmatprep.subr.mxu0 0.0
    %289 = vmatpush1.msra.mxu0 0.0
    %290 = vmatprep.subr.mxu0 0.0
    %291 = vmatpush1.msra.mxu0 0.0
    %292 = vmatprep.subr.mxu0 0.0
    %293 = vmatpush1.msra.mxu0 0.0
    %294 = vmatprep.subr.mxu0 0.0
    %295 = vmatpush1.msra.mxu0 0.0
    %296 = vmatprep.subr.mxu0 0.0
    %297 = vmatpush1.msra.mxu0 0.0
    %298 = vmatprep.subr.mxu0 0.0
    %299 = vmatpush1.msra.mxu0 0.0
    %300 = vmatprep.subr.mxu0 0.0
    %301 = vmatpush1.msra.mxu0 0.0
    %302 = vmatprep.subr.mxu0 0.0
    %303 = vmatpush1.msra.mxu0 0.0
    %304 = vmatprep.subr.mxu0 0.0
    %305 = vmatpush1.msra.mxu0 0.0
    %306 = vmatprep.subr.mxu0 0.0
    %307 = vmatpush1.msra.mxu0 0.0
    %308 = vmatprep.subr.mxu0 0.0
    %309 = vmatpush1.msra.mxu0 0.0
    %310 = vmatprep.subr.mxu0 0.0
    %311 = vmatpush1.msra.mxu0 0.0
    %312 = vmatprep.subr.mxu0 0.0
    %313 = vmatpush1.msra.mxu0 0.0
    %314 = vmatprep.subr.mxu0 0.0
    %315 = vmatpush1.msra.mxu0 0.0
    %316 = vmatprep.subr.mxu0 0.0
    %317 = vmatpush1.msra.mxu0 0.0
    %318 = vmatprep.subr.mxu0 0.0
    %319 = vmatpush1.msra.mxu0 0.0
    %320 = vmatprep.subr.mxu0 0.0
    %321 = vmatpush1.msra.mxu0 0.0
    %322 = vmatprep.subr.mxu0 0.0
    %323 = vmatpush1.msra.mxu0 0.0
    %324 = vmatprep.subr.mxu0 0.0
    %325 = vmatpush1.msra.mxu0 0.0
    %326 = vmatprep.subr.mxu0 0.0
    %327 = vmatpush1.msra.mxu0 0.0
    %328 = vmatprep.subr.mxu0 0.0
    %329 = vmatpush1.msra.mxu0 0.0
    %330 = vmatprep.subr.mxu0 0.0
    %331 = vmatpush1.msra.mxu0 0.0
    %332 = vmatprep.subr.mxu0 0.0
    %333 = vmatpush1.msra.mxu0 0.0
    %334 = vmatprep.subr.mxu0 0.0
    %335 = vmatpush1.msra.mxu0 0.0
    %336 = vmatprep.mubr.f32.mxu0 0.0
    %v337 = vand.u32 %v73, 4294901760
    %v338 = vsub.f32 %v73, %v337
    %339 = vmatmul.mubr.f32.gmra.mrb[0].mxu0 %v338
    %v340 = vpop.f32.mrb[0].mxu0
    %v341 = vadd.f32 %v255, %v340
    %v342 = vpop.f32.mrb[0].mxu0
    %343 = vmatprep.mubr.f32.mxu0 0.0
    %v344 = vand.u32 %v76, 4294901760
    %v345 = vsub.f32 %v76, %v344
    %346 = vmatmul.mubr.f32.gmra.mrb[0].mxu0 %v345
    %v347 = vpop.f32.mrb[0].mxu0
    %v348 = vadd.f32 %v261, %v347
    %v349 = vpop.f32.mrb[0].mxu0
    %350 = vdwg.mxu0
    %351 = vmatprep.subr.mxu0 0.0
    %v352 = vand.u32 %v67, 4294901760
    %353 = vmatpush1.msra.mxu0 %v352
    %354 = vmatprep.subr.mxu0 0.0
    %v355 = vand.u32 %v68, 4294901760
    %356 = vmatpush1.msra.mxu0 %v355
    %357 = vmatprep.subr.mxu0 0.0
    %v358 = vand.u32 %v69, 4294901760
    %359 = vmatpush1.msra.mxu0 %v358
    %360 = vmatprep.subr.mxu0 0.0
    %v361 = vand.u32 %v70, 4294901760
    %362 = vmatpush1.msra.mxu0 %v361
    %363 = vmatprep.subr.mxu0 0.0
    %364 = vmatpush1.msra.mxu0 0.0
    %365 = vmatprep.subr.mxu0 0.0
    %366 = vmatpush1.msra.mxu0 0.0
    %367 = vmatprep.subr.mxu0 0.0
    %368 = vmatpush1.msra.mxu0 0.0
    %369 = vmatprep.subr.mxu0 0.0
    %370 = vmatpush1.msra.mxu0 0.0
    %371 = vmatprep.subr.mxu0 0.0
    %372 = vmatpush1.msra.mxu0 0.0
    %373 = vmatprep.subr.mxu0 0.0
    %374 = vmatpush1.msra.mxu0 0.0
    %375 = vmatprep.subr.mxu0 0.0
    %376 = vmatpush1.msra.mxu0 0.0
    %377 = vmatprep.subr.mxu0 0.0
    %378 = vmatpush1.msra.mxu0 0.0
    %379 = vmatprep.subr.mxu0 0.0
    %380 = vmatpush1.msra.mxu0 0.0
    %381 = vmatprep.subr.mxu0 0.0
    %382 = vmatpush1.msra.mxu0 0.0
    %383 = vmatprep.subr.mxu0 0.0
    %384 = vmatpush1.msra.mxu0 0.0
    %385 = vmatprep.subr.mxu0 0.0
    %386 = vmatpush1.msra.mxu0 0.0
    %387 = vmatprep.subr.mxu0 0.0
    %388 = vmatpush1.msra.mxu0 0.0
    %389 = vmatprep.subr.mxu0 0.0
    %390 = vmatpush1.msra.mxu0 0.0
    %391 = vmatprep.subr.mxu0 0.0
    %392 = vmatpush1.msra.mxu0 0.0
    %393 = vmatprep.subr.mxu0 0.0
    %394 = vmatpush1.msra.mxu0 0.0
    %395 = vmatprep.subr.mxu0 0.0
    %396 = vmatpush1.msra.mxu0 0.0
    %397 = vmatprep.subr.mxu0 0.0
    %398 = vmatpush1.msra.mxu0 0.0
    %399 = vmatprep.subr.mxu0 0.0
    %400 = vmatpush1.msra.mxu0 0.0
    %401 = vmatprep.subr.mxu0 0.0
    %402 = vmatpush1.msra.mxu0 0.0
    %403 = vmatprep.subr.mxu0 0.0
    %404 = vmatpush1.msra.mxu0 0.0
    %405 = vmatprep.subr.mxu0 0.0
    %406 = vmatpush1.msra.mxu0 0.0
    %407 = vmatprep.subr.mxu0 0.0
    %408 = vmatpush1.msra.mxu0 0.0
    %409 = vmatprep.subr.mxu0 0.0
    %410 = vmatpush1.msra.mxu0 0.0
    %411 = vmatprep.subr.mxu0 0.0
    %412 = vmatpush1.msra.mxu0 0.0
    %413 = vmatprep.subr.mxu0 0.0
    %414 = vmatpush1.msra.mxu0 0.0
    %415 = vmatprep.subr.mxu0 0.0
    %416 = vmatpush1.msra.mxu0 0.0
    %417 = vmatprep.subr.mxu0 0.0
    %418 = vmatpush1.msra.mxu0 0.0
    %419 = vmatprep.mubr.f32.mxu0 0.0
    %v420 = vand.u32 %v73, 4294901760
    %v421 = vsub.f32 %v73, %v420
    %v422 = vand.u32 %v421, 4294901760
    %423 = vmatmul.mubr.f32.gmra.mrb[0].mxu0 %v422
    %v424 = vpop.f32.mrb[0].mxu0
    %v425 = vadd.f32 %v341, %v424
    %v426 = vpop.f32.mrb[0].mxu0
    %427 = vmatprep.mubr.f32.mxu0 0.0
    %v428 = vand.u32 %v76, 4294901760
    %v429 = vsub.f32 %v76, %v428
    %v430 = vand.u32 %v429, 4294901760
    %431 = vmatmul.mubr.f32.gmra.mrb[0].mxu0 %v430
    %v432 = vpop.f32.mrb[0].mxu0
    %v433 = vadd.f32 %v348, %v432
    %v434 = vpop.f32.mrb[0].mxu0
    %435 = vdwg.mxu0
    %436 = vmatprep.subr.mxu0 0.0
    %v437 = vand.u32 %v67, 4294901760
    %v438 = vsub.f32 %v67, %v437
    %v439 = vand.u32 %v438, 4294901760
    %440 = vmatpush1.msra.mxu0 %v439
    %441 = vmatprep.subr.mxu0 0.0
    %v442 = vand.u32 %v68, 4294901760
    %v443 = vsub.f32 %v68, %v442
    %v444 = vand.u32 %v443, 4294901760
    %445 = vmatpush1.msra.mxu0 %v444
    %446 = vmatprep.subr.mxu0 0.0
    %v447 = vand.u32 %v69, 4294901760
    %v448 = vsub.f32 %v69, %v447
    %v449 = vand.u32 %v448, 4294901760
    %450 = vmatpush1.msra.mxu0 %v449
    %451 = vmatprep.subr.mxu0 0.0
    %v452 = vand.u32 %v70, 4294901760
    %v453 = vsub.f32 %v70, %v452
    %v454 = vand.u32 %v453, 4294901760
    %455 = vmatpush1.msra.mxu0 %v454
    %456 = vmatprep.subr.mxu0 0.0
    %457 = vmatpush1.msra.mxu0 0.0
    %458 = vmatprep.subr.mxu0 0.0
    %459 = vmatpush1.msra.mxu0 0.0
    %460 = vmatprep.subr.mxu0 0.0
    %461 = vmatpush1.msra.mxu0 0.0
    %462 = vmatprep.subr.mxu0 0.0
    %463 = vmatpush1.msra.mxu0 0.0
    %464 = vmatprep.subr.mxu0 0.0
    %465 = vmatpush1.msra.mxu0 0.0
    %466 = vmatprep.subr.mxu0 0.0
    %467 = vmatpush1.msra.mxu0 0.0
    %468 = vmatprep.subr.mxu0 0.0
    %469 = vmatpush1.msra.mxu0 0.0
    %470 = vmatprep.subr.mxu0 0.0
    %471 = vmatpush1.msra.mxu0 0.0
    %472 = vmatprep.subr.mxu0 0.0
    %473 = vmatpush1.msra.mxu0 0.0
    %474 = vmatprep.subr.mxu0 0.0
    %475 = vmatpush1.msra.mxu0 0.0
    %476 = vmatprep.subr.mxu0 0.0
    %477 = vmatpush1.msra.mxu0 0.0
    %478 = vmatprep.subr.mxu0 0.0
    %479 = vmatpush1.msra.mxu0 0.0
    %480 = vmatprep.subr.mxu0 0.0
    %481 = vmatpush1.msra.mxu0 0.0
    %482 = vmatprep.subr.mxu0 0.0
    %483 = vmatpush1.msra.mxu0 0.0
    %484 = vmatprep.subr.mxu0 0.0
    %485 = vmatpush1.msra.mxu0 0.0
    %486 = vmatprep.subr.mxu0 0.0
    %487 = vmatpush1.msra.mxu0 0.0
    %488 = vmatprep.subr.mxu0 0.0
    %489 = vmatpush1.msra.mxu0 0.0
    %490 = vmatprep.subr.mxu0 0.0
    %491 = vmatpush1.msra.mxu0 0.0
    %492 = vmatprep.subr.mxu0 0.0
    %493 = vmatpush1.msra.mxu0 0.0
    %494 = vmatprep.subr.mxu0 0.0
    %495 = vmatpush1.msra.mxu0 0.0
    %496 = vmatprep.subr.mxu0 0.0
    %497 = vmatpush1.msra.mxu0 0.0
    %498 = vmatprep.subr.mxu0 0.0
    %499 = vmatpush1.msra.mxu0 0.0
    %500 = vmatprep.subr.mxu0 0.0
    %501 = vmatpush1.msra.mxu0 0.0
    %502 = vmatprep.subr.mxu0 0.0
    %503 = vmatpush1.msra.mxu0 0.0
    %504 = vmatprep.subr.mxu0 0.0
    %505 = vmatpush1.msra.mxu0 0.0
    %506 = vmatprep.subr.mxu0 0.0
    %507 = vmatpush1.msra.mxu0 0.0
    %508 = vmatprep.subr.mxu0 0.0
    %509 = vmatpush1.msra.mxu0 0.0
    %510 = vmatprep.subr.mxu0 0.0
    %511 = vmatpush1.msra.mxu0 0.0
    %512 = vmatprep.mubr.f32.mxu0 0.0
    %v513 = vand.u32 %v73, 4294901760
    %514 = vmatmul.mubr.f32.gmra.mrb[0].mxu0 %v513
    %v515 = vpop.f32.mrb[0].mxu0
    %v516 = vadd.f32 %v425, %v515
    %v517 = vpop.f32.mrb[0].mxu0
    %518 = vmatprep.mubr.f32.mxu0 0.0
    %v519 = vand.u32 %v76, 4294901760
    %520 = vmatmul.mubr.f32.gmra.mrb[0].mxu0 %v519
    %v521 = vpop.f32.mrb[0].mxu0
    %v522 = vadd.f32 %v433, %v521
    %v523 = vpop.f32.mrb[0].mxu0
    %524 = vdwg.mxu0
    %525 = vmatprep.subr.mxu0 0.0
    %v526 = vand.u32 %v67, 4294901760
    %527 = vmatpush1.msra.mxu0 %v526
    %528 = vmatprep.subr.mxu0 0.0
    %v529 = vand.u32 %v68, 4294901760
    %530 = vmatpush1.msra.mxu0 %v529
    %531 = vmatprep.subr.mxu0 0.0
    %v532 = vand.u32 %v69, 4294901760
    %533 = vmatpush1.msra.mxu0 %v532
    %534 = vmatprep.subr.mxu0 0.0
    %v535 = vand.u32 %v70, 4294901760
    %536 = vmatpush1.msra.mxu0 %v535
    %537 = vmatprep.subr.mxu0 0.0
    %538 = vmatpush1.msra.mxu0 0.0
    %539 = vmatprep.subr.mxu0 0.0
    %540 = vmatpush1.msra.mxu0 0.0
    %541 = vmatprep.subr.mxu0 0.0
    %542 = vmatpush1.msra.mxu0 0.0
    %543 = vmatprep.subr.mxu0 0.0
    %544 = vmatpush1.msra.mxu0 0.0
    %545 = vmatprep.subr.mxu0 0.0
    %546 = vmatpush1.msra.mxu0 0.0
    %547 = vmatprep.subr.mxu0 0.0
    %548 = vmatpush1.msra.mxu0 0.0
    %549 = vmatprep.subr.mxu0 0.0
    %550 = vmatpush1.msra.mxu0 0.0
    %551 = vmatprep.subr.mxu0 0.0
    %552 = vmatpush1.msra.mxu0 0.0
    %553 = vmatprep.subr.mxu0 0.0
    %554 = vmatpush1.msra.mxu0 0.0
    %555 = vmatprep.subr.mxu0 0.0
    %556 = vmatpush1.msra.mxu0 0.0
    %557 = vmatprep.subr.mxu0 0.0
    %558 = vmatpush1.msra.mxu0 0.0
    %559 = vmatprep.subr.mxu0 0.0
    %560 = vmatpush1.msra.mxu0 0.0
    %561 = vmatprep.subr.mxu0 0.0
    %562 = vmatpush1.msra.mxu0 0.0
    %563 = vmatprep.subr.mxu0 0.0
    %564 = vmatpush1.msra.mxu0 0.0
    %565 = vmatprep.subr.mxu0 0.0
    %566 = vmatpush1.msra.mxu0 0.0
    %567 = vmatprep.subr.mxu0 0.0
    %568 = vmatpush1.msra.mxu0 0.0
    %569 = vmatprep.subr.mxu0 0.0
    %570 = vmatpush1.msra.mxu0 0.0
    %571 = vmatprep.subr.mxu0 0.0
    %572 = vmatpush1.msra.mxu0 0.0
    %573 = vmatprep.subr.mxu0 0.0
    %574 = vmatpush1.msra.mxu0 0.0
    %575 = vmatprep.subr.mxu0 0.0
    %576 = vmatpush1.msra.mxu0 0.0
    %577 = vmatprep.subr.mxu0 0.0
    %578 = vmatpush1.msra.mxu0 0.0
    %579 = vmatprep.subr.mxu0 0.0
    %580 = vmatpush1.msra.mxu0 0.0
    %581 = vmatprep.subr.mxu0 0.0
    %582 = vmatpush1.msra.mxu0 0.0
    %583 = vmatprep.subr.mxu0 0.0
    %584 = vmatpush1.msra.mxu0 0.0
    %585 = vmatprep.subr.mxu0 0.0
    %586 = vmatpush1.msra.mxu0 0.0
    %587 = vmatprep.subr.mxu0 0.0
    %588 = vmatpush1.msra.mxu0 0.0
    %589 = vmatprep.subr.mxu0 0.0
    %590 = vmatpush1.msra.mxu0 0.0
    %591 = vmatprep.subr.mxu0 0.0
    %592 = vmatpush1.msra.mxu0 0.0
    %593 = vmatprep.mubr.f32.mxu0 0.0
    %v594 = vand.u32 %v73, 4294901760
    %595 = vmatmul.mubr.f32.gmra.mrb[0].mxu0 %v594
    %v596 = vpop.f32.mrb[0].mxu0
    %v597 = vadd.f32 %v516, %v596
    %v598 = vpop.f32.mrb[0].mxu0
    %599 = vmatprep.mubr.f32.mxu0 0.0
    %v600 = vand.u32 %v76, 4294901760
    %601 = vmatmul.mubr.f32.gmra.mrb[0].mxu0 %v600
    %v602 = vpop.f32.mrb[0].mxu0
    %v603 = vadd.f32 %v522, %v602
    %v604 = vpop.f32.mrb[0].mxu0
    %605 = vdwg.mxu0
    %v606 = vld [vmem:[#allocation6] sm:$0xff]
    %v607 = vld [vmem:[#allocation6 + $0x8] sm:$0xff]
    %v608 = vld [vmem:[#allocation6 + $0x10] sm:$0xff]
    %v609 = vld [vmem:[#allocation6 + $0x18] sm:$0xff]
    %v610 = vld [vmem:[%s3] sm:$0x1]
    %v612 = vlaneseq
    %v613 = vshrl.u32 %v612, 7
    %v614 = vsub.s32 0, %v613
    %v615 = vrot.slane %v610, %v614
    %v618 = vsel %vm71, %v597, 0
    %v621 = vsel %vm71, %v603, 0
    %623 = vmatprep.subr.mxu0 0.0
    %v624 = vand.u32 %v606, 4294901760
    %625 = vmatpush1.msra.mxu0 %v624
    %626 = vmatprep.subr.mxu0 0.0
    %v627 = vand.u32 %v607, 4294901760
    %628 = vmatpush1.msra.mxu0 %v627
    %629 = vmatprep.subr.mxu0 0.0
    %v630 = vand.u32 %v608, 4294901760
    %631 = vmatpush1.msra.mxu0 %v630
    %632 = vmatprep.subr.mxu0 0.0
    %v633 = vand.u32 %v609, 4294901760
    %634 = vmatpush1.msra.mxu0 %v633
    %635 = vmatprep.subr.mxu0 0.0
    %636 = vmatpush1.msra.mxu0 0.0
    %637 = vmatprep.subr.mxu0 0.0
    %638 = vmatpush1.msra.mxu0 0.0
    %639 = vmatprep.subr.mxu0 0.0
    %640 = vmatpush1.msra.mxu0 0.0
    %641 = vmatprep.subr.mxu0 0.0
    %642 = vmatpush1.msra.mxu0 0.0
    %643 = vmatprep.subr.mxu0 0.0
    %644 = vmatpush1.msra.mxu0 0.0
    %645 = vmatprep.subr.mxu0 0.0
    %646 = vmatpush1.msra.mxu0 0.0
    %647 = vmatprep.subr.mxu0 0.0
    %648 = vmatpush1.msra.mxu0 0.0
    %649 = vmatprep.subr.mxu0 0.0
    %650 = vmatpush1.msra.mxu0 0.0
    %651 = vmatprep.subr.mxu0 0.0
    %652 = vmatpush1.msra.mxu0 0.0
    %653 = vmatprep.subr.mxu0 0.0
    %654 = vmatpush1.msra.mxu0 0.0
    %655 = vmatprep.subr.mxu0 0.0
    %656 = vmatpush1.msra.mxu0 0.0
    %657 = vmatprep.subr.mxu0 0.0
    %658 = vmatpush1.msra.mxu0 0.0
    %659 = vmatprep.subr.mxu0 0.0
    %660 = vmatpush1.msra.mxu0 0.0
    %661 = vmatprep.subr.mxu0 0.0
    %662 = vmatpush1.msra.mxu0 0.0
    %663 = vmatprep.subr.mxu0 0.0
    %664 = vmatpush1.msra.mxu0 0.0
    %665 = vmatprep.subr.mxu0 0.0
    %666 = vmatpush1.msra.mxu0 0.0
    %667 = vmatprep.subr.mxu0 0.0
    %668 = vmatpush1.msra.mxu0 0.0
    %669 = vmatprep.subr.mxu0 0.0
    %670 = vmatpush1.msra.mxu0 0.0
    %671 = vmatprep.subr.mxu0 0.0
    %672 = vmatpush1.msra.mxu0 0.0
    %673 = vmatprep.subr.mxu0 0.0
    %674 = vmatpush1.msra.mxu0 0.0
    %675 = vmatprep.subr.mxu0 0.0
    %676 = vmatpush1.msra.mxu0 0.0
    %677 = vmatprep.subr.mxu0 0.0
    %678 = vmatpush1.msra.mxu0 0.0
    %679 = vmatprep.subr.mxu0 0.0
    %680 = vmatpush1.msra.mxu0 0.0
    %681 = vmatprep.subr.mxu0 0.0
    %682 = vmatpush1.msra.mxu0 0.0
    %683 = vmatprep.subr.mxu0 0.0
    %684 = vmatpush1.msra.mxu0 0.0
    %685 = vmatprep.subr.mxu0 0.0
    %686 = vmatpush1.msra.mxu0 0.0
    %687 = vmatprep.subr.mxu0 0.0
    %688 = vmatpush1.msra.mxu0 0.0
    %689 = vmatprep.subr.mxu0 0.0
    %690 = vmatpush1.msra.mxu0 0.0
    %691 = vmatprep.mubr.f32.mxu0 0.0
    %v692 = vand.u32 %v618, 4294901760
    %v693 = vsub.f32 %v618, %v692
    %v694 = vand.u32 %v693, 4294901760
    %v695 = vsub.f32 %v693, %v694
    %v696 = vand.u32 %v695, 4294901760
    %697 = vmatmul.mubr.f32.gmra.mrb[0].mxu0 %v696
    %v698 = vpop.f32.mrb[0].mxu0
    %v699 = vadd.f32 %v615, %v698
    %v700 = vpop.f32.mrb[0].mxu0
    %701 = vmatprep.mubr.f32.mxu0 0.0
    %v702 = vand.u32 %v621, 4294901760
    %v703 = vsub.f32 %v621, %v702
    %v704 = vand.u32 %v703, 4294901760
    %v705 = vsub.f32 %v703, %v704
    %v706 = vand.u32 %v705, 4294901760
    %707 = vmatmul.mubr.f32.gmra.mrb[0].mxu0 %v706
    %v708 = vpop.f32.mrb[0].mxu0
    %v709 = vadd.f32 %v615, %v708
    %v710 = vpop.f32.mrb[0].mxu0
    %711 = vdwg.mxu0
    %712 = vmatprep.subr.mxu0 0.0
    %v713 = vand.u32 %v606, 4294901760
    %v714 = vsub.f32 %v606, %v713
    %v715 = vand.u32 %v714, 4294901760
    %v716 = vsub.f32 %v714, %v715
    %v717 = vand.u32 %v716, 4294901760
    %718 = vmatpush1.msra.mxu0 %v717
    %719 = vmatprep.subr.mxu0 0.0
    %v720 = vand.u32 %v607, 4294901760
    %v721 = vsub.f32 %v607, %v720
    %v722 = vand.u32 %v721, 4294901760
    %v723 = vsub.f32 %v721, %v722
    %v724 = vand.u32 %v723, 4294901760
    %725 = vmatpush1.msra.mxu0 %v724
    %726 = vmatprep.subr.mxu0 0.0
    %v727 = vand.u32 %v608, 4294901760
    %v728 = vsub.f32 %v608, %v727
    %v729 = vand.u32 %v728, 4294901760
    %v730 = vsub.f32 %v728, %v729
    %v731 = vand.u32 %v730, 4294901760
    %732 = vmatpush1.msra.mxu0 %v731
    %733 = vmatprep.subr.mxu0 0.0
    %v734 = vand.u32 %v609, 4294901760
    %v735 = vsub.f32 %v609, %v734
    %v736 = vand.u32 %v735, 4294901760
    %v737 = vsub.f32 %v735, %v736
    %v738 = vand.u32 %v737, 4294901760
    %739 = vmatpush1.msra.mxu0 %v738
    %740 = vmatprep.subr.mxu0 0.0
    %741 = vmatpush1.msra.mxu0 0.0
    %742 = vmatprep.subr.mxu0 0.0
    %743 = vmatpush1.msra.mxu0 0.0
    %744 = vmatprep.subr.mxu0 0.0
    %745 = vmatpush1.msra.mxu0 0.0
    %746 = vmatprep.subr.mxu0 0.0
    %747 = vmatpush1.msra.mxu0 0.0
    %748 = vmatprep.subr.mxu0 0.0
    %749 = vmatpush1.msra.mxu0 0.0
    %750 = vmatprep.subr.mxu0 0.0
    %751 = vmatpush1.msra.mxu0 0.0
    %752 = vmatprep.subr.mxu0 0.0
    %753 = vmatpush1.msra.mxu0 0.0
    %754 = vmatprep.subr.mxu0 0.0
    %755 = vmatpush1.msra.mxu0 0.0
    %756 = vmatprep.subr.mxu0 0.0
    %757 = vmatpush1.msra.mxu0 0.0
    %758 = vmatprep.subr.mxu0 0.0
    %759 = vmatpush1.msra.mxu0 0.0
    %760 = vmatprep.subr.mxu0 0.0
    %761 = vmatpush1.msra.mxu0 0.0
    %762 = vmatprep.subr.mxu0 0.0
    %763 = vmatpush1.msra.mxu0 0.0
    %764 = vmatprep.subr.mxu0 0.0
    %765 = vmatpush1.msra.mxu0 0.0
    %766 = vmatprep.subr.mxu0 0.0
    %767 = vmatpush1.msra.mxu0 0.0
    %768 = vmatprep.subr.mxu0 0.0
    %769 = vmatpush1.msra.mxu0 0.0
    %770 = vmatprep.subr.mxu0 0.0
    %771 = vmatpush1.msra.mxu0 0.0
    %772 = vmatprep.subr.mxu0 0.0
    %773 = vmatpush1.msra.mxu0 0.0
    %774 = vmatprep.subr.mxu0 0.0
    %775 = vmatpush1.msra.mxu0 0.0
    %776 = vmatprep.subr.mxu0 0.0
    %777 = vmatpush1.msra.mxu0 0.0
    %778 = vmatprep.subr.mxu0 0.0
    %779 = vmatpush1.msra.mxu0 0.0
    %780 = vmatprep.subr.mxu0 0.0
    %781 = vmatpush1.msra.mxu0 0.0
    %782 = vmatprep.subr.mxu0 0.0
    %783 = vmatpush1.msra.mxu0 0.0
    %784 = vmatprep.subr.mxu0 0.0
    %785 = vmatpush1.msra.mxu0 0.0
    %786 = vmatprep.subr.mxu0 0.0
    %787 = vmatpush1.msra.mxu0 0.0
    %788 = vmatprep.subr.mxu0 0.0
    %789 = vmatpush1.msra.mxu0 0.0
    %790 = vmatprep.subr.mxu0 0.0
    %791 = vmatpush1.msra.mxu0 0.0
    %792 = vmatprep.subr.mxu0 0.0
    %793 = vmatpush1.msra.mxu0 0.0
    %794 = vmatprep.subr.mxu0 0.0
    %795 = vmatpush1.msra.mxu0 0.0
    %796 = vmatprep.mubr.f32.mxu0 0.0
    %v797 = vand.u32 %v618, 4294901760
    %798 = vmatmul.mubr.f32.gmra.mrb[0].mxu0 %v797
    %v799 = vpop.f32.mrb[0].mxu0
    %v800 = vadd.f32 %v699, %v799
    %v801 = vpop.f32.mrb[0].mxu0
    %802 = vmatprep.mubr.f32.mxu0 0.0
    %v803 = vand.u32 %v621, 4294901760
    %804 = vmatmul.mubr.f32.gmra.mrb[0].mxu0 %v803
    %v805 = vpop.f32.mrb[0].mxu0
    %v806 = vadd.f32 %v709, %v805
    %v807 = vpop.f32.mrb[0].mxu0
    %808 = vdwg.mxu0
    %809 = vmatprep.subr.mxu0 0.0
    %v810 = vand.u32 %v606, 4294901760
    %v811 = vsub.f32 %v606, %v810
    %812 = vmatpush1.msra.mxu0 %v811
    %813 = vmatprep.subr.mxu0 0.0
    %v814 = vand.u32 %v607, 4294901760
    %v815 = vsub.f32 %v607, %v814
    %816 = vmatpush1.msra.mxu0 %v815
    %817 = vmatprep.subr.mxu0 0.0
    %v818 = vand.u32 %v608, 4294901760
    %v819 = vsub.f32 %v608, %v818
    %820 = vmatpush1.msra.mxu0 %v819
    %821 = vmatprep.subr.mxu0 0.0
    %v822 = vand.u32 %v609, 4294901760
    %v823 = vsub.f32 %v609, %v822
    %824 = vmatpush1.msra.mxu0 %v823
    %825 = vmatprep.subr.mxu0 0.0
    %826 = vmatpush1.msra.mxu0 0.0
    %827 = vmatprep.subr.mxu0 0.0
    %828 = vmatpush1.msra.mxu0 0.0
    %829 = vmatprep.subr.mxu0 0.0
    %830 = vmatpush1.msra.mxu0 0.0
    %831 = vmatprep.subr.mxu0 0.0
    %832 = vmatpush1.msra.mxu0 0.0
    %833 = vmatprep.subr.mxu0 0.0
    %834 = vmatpush1.msra.mxu0 0.0
    %835 = vmatprep.subr.mxu0 0.0
    %836 = vmatpush1.msra.mxu0 0.0
    %837 = vmatprep.subr.mxu0 0.0
    %838 = vmatpush1.msra.mxu0 0.0
    %839 = vmatprep.subr.mxu0 0.0
    %840 = vmatpush1.msra.mxu0 0.0
    %841 = vmatprep.subr.mxu0 0.0
    %842 = vmatpush1.msra.mxu0 0.0
    %843 = vmatprep.subr.mxu0 0.0
    %844 = vmatpush1.msra.mxu0 0.0
    %845 = vmatprep.subr.mxu0 0.0
    %846 = vmatpush1.msra.mxu0 0.0
    %847 = vmatprep.subr.mxu0 0.0
    %848 = vmatpush1.msra.mxu0 0.0
    %849 = vmatprep.subr.mxu0 0.0
    %850 = vmatpush1.msra.mxu0 0.0
    %851 = vmatprep.subr.mxu0 0.0
    %852 = vmatpush1.msra.mxu0 0.0
    %853 = vmatprep.subr.mxu0 0.0
    %854 = vmatpush1.msra.mxu0 0.0
    %855 = vmatprep.subr.mxu0 0.0
    %856 = vmatpush1.msra.mxu0 0.0
    %857 = vmatprep.subr.mxu0 0.0
    %858 = vmatpush1.msra.mxu0 0.0
    %859 = vmatprep.subr.mxu0 0.0
    %860 = vmatpush1.msra.mxu0 0.0
    %861 = vmatprep.subr.mxu0 0.0
    %862 = vmatpush1.msra.mxu0 0.0
    %863 = vmatprep.subr.mxu0 0.0
    %864 = vmatpush1.msra.mxu0 0.0
    %865 = vmatprep.subr.mxu0 0.0
    %866 = vmatpush1.msra.mxu0 0.0
    %867 = vmatprep.subr.mxu0 0.0
    %868 = vmatpush1.msra.mxu0 0.0
    %869 = vmatprep.subr.mxu0 0.0
    %870 = vmatpush1.msra.mxu0 0.0
    %871 = vmatprep.subr.mxu0 0.0
    %872 = vmatpush1.msra.mxu0 0.0
    %873 = vmatprep.subr.mxu0 0.0
    %874 = vmatpush1.msra.mxu0 0.0
    %875 = vmatprep.subr.mxu0 0.0
    %876 = vmatpush1.msra.mxu0 0.0
    %877 = vmatprep.subr.mxu0 0.0
    %878 = vmatpush1.msra.mxu0 0.0
    %879 = vmatprep.subr.mxu0 0.0
    %880 = vmatpush1.msra.mxu0 0.0
    %881 = vmatprep.mubr.f32.mxu0 0.0
    %v882 = vand.u32 %v618, 4294901760
    %v883 = vsub.f32 %v618, %v882
    %884 = vmatmul.mubr.f32.gmra.mrb[0].mxu0 %v883
    %v885 = vpop.f32.mrb[0].mxu0
    %v886 = vadd.f32 %v800, %v885
    %v887 = vpop.f32.mrb[0].mxu0
    %888 = vmatprep.mubr.f32.mxu0 0.0
    %v889 = vand.u32 %v621, 4294901760
    %v890 = vsub.f32 %v621, %v889
    %891 = vmatmul.mubr.f32.gmra.mrb[0].mxu0 %v890
    %v892 = vpop.f32.mrb[0].mxu0
    %v893 = vadd.f32 %v806, %v892
    %v894 = vpop.f32.mrb[0].mxu0
    %895 = vdwg.mxu0
    %896 = vmatprep.subr.mxu0 0.0
    %v897 = vand.u32 %v606, 4294901760
    %898 = vmatpush1.msra.mxu0 %v897
    %899 = vmatprep.subr.mxu0 0.0
    %v900 = vand.u32 %v607, 4294901760
    %901 = vmatpush1.msra.mxu0 %v900
    %902 = vmatprep.subr.mxu0 0.0
    %v903 = vand.u32 %v608, 4294901760
    %904 = vmatpush1.msra.mxu0 %v903
    %905 = vmatprep.subr.mxu0 0.0
    %v906 = vand.u32 %v609, 4294901760
    %907 = vmatpush1.msra.mxu0 %v906
    %908 = vmatprep.subr.mxu0 0.0
    %909 = vmatpush1.msra.mxu0 0.0
    %910 = vmatprep.subr.mxu0 0.0
    %911 = vmatpush1.msra.mxu0 0.0
    %912 = vmatprep.subr.mxu0 0.0
    %913 = vmatpush1.msra.mxu0 0.0
    %914 = vmatprep.subr.mxu0 0.0
    %915 = vmatpush1.msra.mxu0 0.0
    %916 = vmatprep.subr.mxu0 0.0
    %917 = vmatpush1.msra.mxu0 0.0
    %918 = vmatprep.subr.mxu0 0.0
    %919 = vmatpush1.msra.mxu0 0.0
    %920 = vmatprep.subr.mxu0 0.0
    %921 = vmatpush1.msra.mxu0 0.0
    %922 = vmatprep.subr.mxu0 0.0
    %923 = vmatpush1.msra.mxu0 0.0
    %924 = vmatprep.subr.mxu0 0.0
    %925 = vmatpush1.msra.mxu0 0.0
    %926 = vmatprep.subr.mxu0 0.0
    %927 = vmatpush1.msra.mxu0 0.0
    %928 = vmatprep.subr.mxu0 0.0
    %929 = vmatpush1.msra.mxu0 0.0
    %930 = vmatprep.subr.mxu0 0.0
    %931 = vmatpush1.msra.mxu0 0.0
    %932 = vmatprep.subr.mxu0 0.0
    %933 = vmatpush1.msra.mxu0 0.0
    %934 = vmatprep.subr.mxu0 0.0
    %935 = vmatpush1.msra.mxu0 0.0
    %936 = vmatprep.subr.mxu0 0.0
    %937 = vmatpush1.msra.mxu0 0.0
    %938 = vmatprep.subr.mxu0 0.0
    %939 = vmatpush1.msra.mxu0 0.0
    %940 = vmatprep.subr.mxu0 0.0
    %941 = vmatpush1.msra.mxu0 0.0
    %942 = vmatprep.subr.mxu0 0.0
    %943 = vmatpush1.msra.mxu0 0.0
    %944 = vmatprep.subr.mxu0 0.0
    %945 = vmatpush1.msra.mxu0 0.0
    %946 = vmatprep.subr.mxu0 0.0
    %947 = vmatpush1.msra.mxu0 0.0
    %948 = vmatprep.subr.mxu0 0.0
    %949 = vmatpush1.msra.mxu0 0.0
    %950 = vmatprep.subr.mxu0 0.0
    %951 = vmatpush1.msra.mxu0 0.0
    %952 = vmatprep.subr.mxu0 0.0
    %953 = vmatpush1.msra.mxu0 0.0
    %954 = vmatprep.subr.mxu0 0.0
    %955 = vmatpush1.msra.mxu0 0.0
    %956 = vmatprep.subr.mxu0 0.0
    %957 = vmatpush1.msra.mxu0 0.0
    %958 = vmatprep.subr.mxu0 0.0
    %959 = vmatpush1.msra.mxu0 0.0
    %960 = vmatprep.subr.mxu0 0.0
    %961 = vmatpush1.msra.mxu0 0.0
    %962 = vmatprep.subr.mxu0 0.0
    %963 = vmatpush1.msra.mxu0 0.0
    %964 = vmatprep.mubr.f32.mxu0 0.0
    %v965 = vand.u32 %v618, 4294901760
    %v966 = vsub.f32 %v618, %v965
    %v967 = vand.u32 %v966, 4294901760
    %968 = vmatmul.mubr.f32.gmra.mrb[0].mxu0 %v967
    %v969 = vpop.f32.mrb[0].mxu0
    %v970 = vadd.f32 %v886, %v969
    %v971 = vpop.f32.mrb[0].mxu0
    %972 = vmatprep.mubr.f32.mxu0 0.0
    %v973 = vand.u32 %v621, 4294901760
    %v974 = vsub.f32 %v621, %v973
    %v975 = vand.u32 %v974, 4294901760
    %976 = vmatmul.mubr.f32.gmra.mrb[0].mxu0 %v975
    %v977 = vpop.f32.mrb[0].mxu0
    %v978 = vadd.f32 %v893, %v977
    %v979 = vpop.f32.mrb[0].mxu0
    %980 = vdwg.mxu0
    %981 = vmatprep.subr.mxu0 0.0
    %v982 = vand.u32 %v606, 4294901760
    %v983 = vsub.f32 %v606, %v982
    %v984 = vand.u32 %v983, 4294901760
    %985 = vmatpush1.msra.mxu0 %v984
    %986 = vmatprep.subr.mxu0 0.0
    %v987 = vand.u32 %v607, 4294901760
    %v988 = vsub.f32 %v607, %v987
    %v989 = vand.u32 %v988, 4294901760
    %990 = vmatpush1.msra.mxu0 %v989
    %991 = vmatprep.subr.mxu0 0.0
    %v992 = vand.u32 %v608, 4294901760
    %v993 = vsub.f32 %v608, %v992
    %v994 = vand.u32 %v993, 4294901760
    %995 = vmatpush1.msra.mxu0 %v994
    %996 = vmatprep.subr.mxu0 0.0
    %v997 = vand.u32 %v609, 4294901760
    %v998 = vsub.f32 %v609, %v997
    %v999 = vand.u32 %v998, 4294901760
    %1000 = vmatpush1.msra.mxu0 %v999
    %1001 = vmatprep.subr.mxu0 0.0
    %1002 = vmatpush1.msra.mxu0 0.0
    %1003 = vmatprep.subr.mxu0 0.0
    %1004 = vmatpush1.msra.mxu0 0.0
    %1005 = vmatprep.subr.mxu0 0.0
    %1006 = vmatpush1.msra.mxu0 0.0
    %1007 = vmatprep.subr.mxu0 0.0
    %1008 = vmatpush1.msra.mxu0 0.0
    %1009 = vmatprep.subr.mxu0 0.0
    %1010 = vmatpush1.msra.mxu0 0.0
    %1011 = vmatprep.subr.mxu0 0.0
    %1012 = vmatpush1.msra.mxu0 0.0
    %1013 = vmatprep.subr.mxu0 0.0
    %1014 = vmatpush1.msra.mxu0 0.0
    %1015 = vmatprep.subr.mxu0 0.0
    %1016 = vmatpush1.msra.mxu0 0.0
    %1017 = vmatprep.subr.mxu0 0.0
    %1018 = vmatpush1.msra.mxu0 0.0
    %1019 = vmatprep.subr.mxu0 0.0
    %1020 = vmatpush1.msra.mxu0 0.0
    %1021 = vmatprep.subr.mxu0 0.0
    %1022 = vmatpush1.msra.mxu0 0.0
    %1023 = vmatprep.subr.mxu0 0.0
    %1024 = vmatpush1.msra.mxu0 0.0
    %1025 = vmatprep.subr.mxu0 0.0
    %1026 = vmatpush1.msra.mxu0 0.0
    %1027 = vmatprep.subr.mxu0 0.0
    %1028 = vmatpush1.msra.mxu0 0.0
    %1029 = vmatprep.subr.mxu0 0.0
    %1030 = vmatpush1.msra.mxu0 0.0
    %1031 = vmatprep.subr.mxu0 0.0
    %1032 = vmatpush1.msra.mxu0 0.0
    %1033 = vmatprep.subr.mxu0 0.0
    %1034 = vmatpush1.msra.mxu0 0.0
    %1035 = vmatprep.subr.mxu0 0.0
    %1036 = vmatpush1.msra.mxu0 0.0
    %1037 = vmatprep.subr.mxu0 0.0
    %1038 = vmatpush1.msra.mxu0 0.0
    %1039 = vmatprep.subr.mxu0 0.0
    %1040 = vmatpush1.msra.mxu0 0.0
    %1041 = vmatprep.subr.mxu0 0.0
    %1042 = vmatpush1.msra.mxu0 0.0
    %1043 = vmatprep.subr.mxu0 0.0
    %1044 = vmatpush1.msra.mxu0 0.0
    %1045 = vmatprep.subr.mxu0 0.0
    %1046 = vmatpush1.msra.mxu0 0.0
    %1047 = vmatprep.subr.mxu0 0.0
    %1048 = vmatpush1.msra.mxu0 0.0
    %1049 = vmatprep.subr.mxu0 0.0
    %1050 = vmatpush1.msra.mxu0 0.0
    %1051 = vmatprep.subr.mxu0 0.0
    %1052 = vmatpush1.msra.mxu0 0.0
    %1053 = vmatprep.subr.mxu0 0.0
    %1054 = vmatpush1.msra.mxu0 0.0
    %1055 = vmatprep.subr.mxu0 0.0
    %1056 = vmatpush1.msra.mxu0 0.0
    %1057 = vmatprep.mubr.f32.mxu0 0.0
    %v1058 = vand.u32 %v618, 4294901760
    %1059 = vmatmul.mubr.f32.gmra.mrb[0].mxu0 %v1058
    %v1060 = vpop.f32.mrb[0].mxu0
    %v1061 = vadd.f32 %v970, %v1060
    %v1062 = vpop.f32.mrb[0].mxu0
    %1063 = vmatprep.mubr.f32.mxu0 0.0
    %v1064 = vand.u32 %v621, 4294901760
    %1065 = vmatmul.mubr.f32.gmra.mrb[0].mxu0 %v1064
    %v1066 = vpop.f32.mrb[0].mxu0
    %v1067 = vadd.f32 %v978, %v1066
    %v1068 = vpop.f32.mrb[0].mxu0
    %1069 = vdwg.mxu0
    %1070 = vmatprep.subr.mxu0 0.0
    %v1071 = vand.u32 %v606, 4294901760
    %1072 = vmatpush1.msra.mxu0 %v1071
    %1073 = vmatprep.subr.mxu0 0.0
    %v1074 = vand.u32 %v607, 4294901760
    %1075 = vmatpush1.msra.mxu0 %v1074
    %1076 = vmatprep.subr.mxu0 0.0
    %v1077 = vand.u32 %v608, 4294901760
    %1078 = vmatpush1.msra.mxu0 %v1077
    %1079 = vmatprep.subr.mxu0 0.0
    %v1080 = vand.u32 %v609, 4294901760
    %1081 = vmatpush1.msra.mxu0 %v1080
    %1082 = vmatprep.subr.mxu0 0.0
    %1083 = vmatpush1.msra.mxu0 0.0
    %1084 = vmatprep.subr.mxu0 0.0
    %1085 = vmatpush1.msra.mxu0 0.0
    %1086 = vmatprep.subr.mxu0 0.0
    %1087 = vmatpush1.msra.mxu0 0.0
    %1088 = vmatprep.subr.mxu0 0.0
    %1089 = vmatpush1.msra.mxu0 0.0
    %1090 = vmatprep.subr.mxu0 0.0
    %1091 = vmatpush1.msra.mxu0 0.0
    %1092 = vmatprep.subr.mxu0 0.0
    %1093 = vmatpush1.msra.mxu0 0.0
    %1094 = vmatprep.subr.mxu0 0.0
    %1095 = vmatpush1.msra.mxu0 0.0
    %1096 = vmatprep.subr.mxu0 0.0
    %1097 = vmatpush1.msra.mxu0 0.0
    %1098 = vmatprep.subr.mxu0 0.0
    %1099 = vmatpush1.msra.mxu0 0.0
    %1100 = vmatprep.subr.mxu0 0.0
    %1101 = vmatpush1.msra.mxu0 0.0
    %1102 = vmatprep.subr.mxu0 0.0
    %1103 = vmatpush1.msra.mxu0 0.0
    %1104 = vmatprep.subr.mxu0 0.0
    %1105 = vmatpush1.msra.mxu0 0.0
    %1106 = vmatprep.subr.mxu0 0.0
    %1107 = vmatpush1.msra.mxu0 0.0
    %1108 = vmatprep.subr.mxu0 0.0
    %1109 = vmatpush1.msra.mxu0 0.0
    %1110 = vmatprep.subr.mxu0 0.0
    %1111 = vmatpush1.msra.mxu0 0.0
    %1112 = vmatprep.subr.mxu0 0.0
    %1113 = vmatpush1.msra.mxu0 0.0
    %1114 = vmatprep.subr.mxu0 0.0
    %1115 = vmatpush1.msra.mxu0 0.0
    %1116 = vmatprep.subr.mxu0 0.0
    %1117 = vmatpush1.msra.mxu0 0.0
    %1118 = vmatprep.subr.mxu0 0.0
    %1119 = vmatpush1.msra.mxu0 0.0
    %1120 = vmatprep.subr.mxu0 0.0
    %1121 = vmatpush1.msra.mxu0 0.0
    %1122 = vmatprep.subr.mxu0 0.0
    %1123 = vmatpush1.msra.mxu0 0.0
    %1124 = vmatprep.subr.mxu0 0.0
    %1125 = vmatpush1.msra.mxu0 0.0
    %1126 = vmatprep.subr.mxu0 0.0
    %1127 = vmatpush1.msra.mxu0 0.0
    %1128 = vmatprep.subr.mxu0 0.0
    %1129 = vmatpush1.msra.mxu0 0.0
    %1130 = vmatprep.subr.mxu0 0.0
    %1131 = vmatpush1.msra.mxu0 0.0
    %1132 = vmatprep.subr.mxu0 0.0
    %1133 = vmatpush1.msra.mxu0 0.0
    %1134 = vmatprep.subr.mxu0 0.0
    %1135 = vmatpush1.msra.mxu0 0.0
    %1136 = vmatprep.subr.mxu0 0.0
    %1137 = vmatpush1.msra.mxu0 0.0
    %1138 = vmatprep.mubr.f32.mxu0 0.0
    %v1139 = vand.u32 %v618, 4294901760
    %1140 = vmatmul.mubr.f32.gmra.mrb[0].mxu0 %v1139
    %v1141 = vpop.f32.mrb[0].mxu0
    %v1142 = vadd.f32 %v1061, %v1141
    %v1143 = vpop.f32.mrb[0].mxu0
    %1144 = vmatprep.mubr.f32.mxu0 0.0
    %v1145 = vand.u32 %v621, 4294901760
    %1146 = vmatmul.mubr.f32.gmra.mrb[0].mxu0 %v1145
    %v1147 = vpop.f32.mrb[0].mxu0
    %v1148 = vadd.f32 %v1067, %v1147
    %v1149 = vpop.f32.mrb[0].mxu0
    %1150 = vdwg.mxu0
    %v1151 = vld [vmem:[#allocation2] sm:$0x1]
    %vm1152 = vcmp.gt.f32.partialorder %v1142, 0.0
    %vm1153 = vcmp.gt.f32.partialorder %v1148, 0.0
    %v1155 = vlaneseq
    %v1156 = vshrl.u32 %v1155, 7
    %v1157 = vsub.s32 0, %v1156
    %v1158 = vrot.slane %v1151, %v1157
    %1159 = vset.pattern.permute.xlu0 0
    %1160 = vperm.xlu0 %1159, %v1158
    %v1161 = vpop.permute.xlu0 %1160
    %v1163 = vmul.f32 %v1142, %v1161
    %v1164 = vmul.f32 %v1148, %v1161
    %v1165 = vsel %vm1152, %v1142, %v1163
    %v1166 = vsel %vm1153, %v1148, %v1164
    %1167 = vst.msk [vmem:[#allocation8] sm:$0xff] %vm71, %v1165
    %1168 = vst.msk [vmem:[#allocation8 + $0x8] sm:$0xff] %vm71, %v1166
    // Predicated region
    $region30: #{tpu_custom_call.1} parent=1 // pred_check
      _
    $region31: #{tpu_custom_call.1} parent=1 // pred_check_branch
      %1170 = sbr.rel (0) target = $region33
    $region32: #{tpu_custom_call.1} parent=1 // pred_region
      %s1172 = ssub.s32 256, 256
      %1173 = vsyncadd [#allocation5], %s1172
      %s1174 = sshll.u32 [#allocation8], 4
      %s1175 = int_to_ptr.vmem [resolvable:$true] %s1174
      %1180 = dma.vmem_to_hbm [thread:$0]  %s1175, 256, %s5, [#allocation5], 128, 128, 8
    $region33: #{tpu_custom_call.1} parent=1 // pred_fallthru
      _
    // Predicated region
    $region34: #{tpu_custom_call.1} parent=1 // pred_check
      _
    $region35: #{tpu_custom_call.1} parent=1 // pred_check_branch
      %1182 = sbr.rel (0) target = $region37
    $region36: #{tpu_custom_call.1} parent=1 // pred_region
      %1183 = dma.done [#allocation5], 256
    $region37: #{tpu_custom_call.1} parent=1 // pred_fallthru
      _
    %1184 = vsyncpa [#allocation4], 1
    %1185 = vsyncpa [#allocation7], 1
    %1186 = vsyncpa [#allocation5], 1

</llo_original>
